<compile_context>
chip_gen: v5e
topology: v5e:2x2
jax: 0.10.0
libtpu: 0.0.40
codegen_flags: <defaults>
</compile_context>

<pallas_src>
import jax
import jax.numpy as jnp
from jax.experimental import pallas as pl
from jax.experimental.pallas import tpu as pltpu


def _adj_apply(adj, y):
    """z[b,n,c] = sum_m adj[n,m] * y[b,m,c] as ONE wide MXU matmul.

    Only layout ops with well-supported Mosaic lowerings are used: a last-two-dim
    transpose (XLU) and reshapes that keep the trailing (lane) dimension intact.
    """
    Bt, N, C = y.shape
    y_t = jnp.swapaxes(y, 1, 2)                              # (Bt, C, N)
    y2 = y_t.reshape(Bt * C, N)                              # (Bt*C, N), lanes unchanged
    z2 = jnp.einsum('rm,nm->rn', y2, adj,                    # single 2-D MXU matmul
                    preferred_element_type=jnp.float32)      # (Bt*C, N)
    return jnp.swapaxes(z2.reshape(Bt, C, N), 1, 2)          # (Bt, N, C)


def _spatial_attn_kernel(x_ref, adj_ref, wq_ref, bq_ref, wk_ref, bk_ref, wv_ref, o_ref):
    # One grid step processes block_b (= Bt) batch elements.
    Bt, N, C_in = x_ref.shape
    C_out = wq_ref.shape[1]

    x = x_ref[...]
    x2 = x.reshape(Bt * N, C_in)                             # leading-dim merge -> free
    adj = adj_ref[...]

    # Q / K projections: two separate matmuls (no lane-unaligned slicing of a fused
    # (.., 3*C_out) result; the fused-weight trick only pays when C_out % 128 == 0).
    q = (jnp.dot(x2, wq_ref[...], preferred_element_type=jnp.float32)
         + bq_ref[...]).reshape(Bt, N, C_out)
    k = (jnp.dot(x2, wk_ref[...], preferred_element_type=jnp.float32)
         + bk_ref[...]).reshape(Bt, N, C_out)

    # score = Q @ K^T, contracting the shared C_out axis (no explicit transpose).
    s = jnp.einsum('bnc,bmc->bnm', q, k, preferred_element_type=jnp.float32)

    # softmax over dim=1 of the (B, N, N) tensor == axis 1 of this (Bt, N, N) tile.
    s = s - jnp.max(s, axis=1, keepdims=True)
    e = jnp.exp(s)
    denom = jnp.sum(e, axis=1, keepdims=True)                # (Bt, 1, N)
    p = e * pl.reciprocal(denom, approx=True)                # EUP vrcp (otherwise idle)

    # Reassociated value path (exact):
    #   (p @ adj) @ V == p @ (adj @ V) == p @ ((adj @ x) @ Wv)     [Wv has no bias]
    # Contract adj against the *narrower* operand first.
    if C_in <= C_out:
        ax = _adj_apply(adj, x)                              # (Bt, N, C_in)
        av = jnp.dot(ax.reshape(Bt * N, C_in), wv_ref[...],
                     preferred_element_type=jnp.float32).reshape(Bt, N, C_out)
    else:
        v = jnp.dot(x2, wv_ref[...],
                    preferred_element_type=jnp.float32).reshape(Bt, N, C_out)
        av = _adj_apply(adj, v)                              # (Bt, N, C_out)

    out = jnp.einsum('bnm,bmc->bnc', p, av, preferred_element_type=jnp.float32)

    # Lane-dense store: flatten (node, channel) into the lane axis so the output
    # block's minor dim is N*C_out (a full 128-lane row at the test shape).
    o_ref[0] = out.reshape(Bt, N * C_out).astype(o_ref.dtype)


def _vmem_budget_bytes():
    """Generation-aware VMEM budget; also passed to the compiler as vmem_limit_bytes."""
    default_cap = 64 * 1024 * 1024                # conservative: v7x physical per-core
    try:
        cap = int(getattr(pltpu.get_tpu_info(), "vmem_capacity_bytes", default_cap))
    except Exception:
        cap = default_cap
    # ~25% headroom for compiler-internal scratch; 96 MiB ceiling on 128 MiB parts.
    return max(32 * 1024 * 1024, min(cap * 3 // 4, 96 * 1024 * 1024))


def _pick_block_b(B, N, C_in, C_out, vmem_bytes, min_grid_steps=4):
    """Largest batch tile that divides B, fits the VMEM budget, and keeps at least
    `min_grid_steps` grid steps (>= 2 per TensorCore on dual-core v7x) when B allows."""
    # Rough f32 live bytes per batch element (the (N, N) score tensors dominate).
    per_b = 4 * (3 * N * N + N * (4 * C_in + 6 * C_out))
    # Grid-invariant blocks (adj + weights + biases), double-buffered by the pipeliner.
    const = 4 * 2 * (N * N + 3 * C_in * C_out + 2 * C_out)
    cap = max(1, (vmem_bytes - const) // max(per_b, 1))
    best = 1
    for cand in range(1, B + 1):
        if B % cand:
            continue
        if cand > cap:
            break
        if (B // cand) < min(min_grid_steps, B):
            continue
        best = cand
    return best


def spatial_attention(x, adj, wq, bq, wk, bk, wv, *, block_b=None,
                      vmem_budget_bytes=None, min_grid_steps=4):
    """x: (B, N, C_in), adj: (N, N), wq/wk/wv: (C_in, C_out), bq/bk: (C_out,).

    Weights are stored (C_in, C_out), i.e. transposed vs. PyTorch nn.Linear.
    """
    B, N, C_in = x.shape
    C_out = wq.shape[1]

    if vmem_budget_bytes is None:
        vmem_budget_bytes = _vmem_budget_bytes()
    if block_b is None:
        block_b = _pick_block_b(B, N, C_in, C_out, vmem_budget_bytes, min_grid_steps)
    if B % block_b != 0:
        # TODO(synk): pad the batch (or use pl.BoundedSlice) for non-divisible B.
        raise ValueError(f"block_b={block_b} must divide batch size {B}")
    grid_b = B // block_b

    bq2 = bq.reshape(1, C_out)
    bk2 = bk.reshape(1, C_out)

    out_flat = pl.pallas_call(
        _spatial_attn_kernel,
        # Lane-dense output slab; reshaped back to (B, N, C_out) below (free in HBM).
        out_shape=jax.ShapeDtypeStruct((grid_b, block_b, N * C_out), x.dtype),
        grid_spec=pltpu.PrefetchScalarGridSpec(
            num_scalar_prefetch=0,
            grid=(grid_b,),
            in_specs=[
                pl.BlockSpec((block_b, N, C_in), lambda b: (b, 0, 0)),   # x
                pl.BlockSpec((N, N), lambda b: (0, 0)),                  # adj (resident)
                pl.BlockSpec((C_in, C_out), lambda b: (0, 0)),           # Wq
                pl.BlockSpec((1, C_out), lambda b: (0, 0)),              # bq
                pl.BlockSpec((C_in, C_out), lambda b: (0, 0)),           # Wk
                pl.BlockSpec((1, C_out), lambda b: (0, 0)),              # bk
                pl.BlockSpec((C_in, C_out), lambda b: (0, 0)),           # Wv
            ],
            out_specs=pl.BlockSpec((1, block_b, N * C_out), lambda b: (b, 0, 0)),
        ),
        compiler_params=pltpu.CompilerParams(
            dimension_semantics=("parallel",),
            vmem_limit_bytes=int(vmem_budget_bytes)),
    )(x, adj, wq, bq2, wk, bk2, wv)

    return out_flat.reshape(B, N, C_out)


def _reference(x, adj, wq, bq, wk, bk, wv):
    q = x @ wq + bq
    k = x @ wk + bk
    v = x @ wv
    s = jnp.einsum('bnc,bmc->bnm', q, k)
    s = jax.nn.softmax(s, axis=1)                  # dim=1 in PyTorch
    s = jnp.einsum('bnm,mc->bnc', s, adj)
    return jnp.einsum('bnm,bmc->bnc', s, v)


if __name__ == "__main__":
    B, N, C_in, C_out = 8, 16, 4, 8                # N*C_out = 128 -> one full vreg row

    key = jax.random.PRNGKey(0)
    kx, ka, k1, k2, k3, k4, k5 = jax.random.split(key, 7)

    x = jax.random.normal(kx, (B, N, C_in), dtype=jnp.float32)
    adj = jax.random.uniform(ka, (N, N), dtype=jnp.float32)

    # Deterministic parameter init (nn.Linear-style uniform bound 1/sqrt(C_in)).
    bound = 1.0 / (C_in ** 0.5)
    wq = jax.random.uniform(k1, (C_in, C_out), jnp.float32, -bound, bound)
    bq = jax.random.uniform(k2, (C_out,), jnp.float32, -bound, bound)
    wk = jax.random.uniform(k3, (C_in, C_out), jnp.float32, -bound, bound)
    bk = jax.random.uniform(k4, (C_out,), jnp.float32, -bound, bound)
    wv = jax.random.uniform(k5, (C_in, C_out), jnp.float32, -bound, bound)

    out = spatial_attention(x, adj, wq, bq, wk, bk, wv)
    out = jax.block_until_ready(out)

    ref = _reference(x, adj, wq, bq, wk, bk, wv)
    assert out.shape == (B, N, C_out)
    # Tolerance covers the EUP approximate reciprocal in the softmax denominator plus
    # the (exact) matmul reassociations' floating-point reordering.
    assert jnp.allclose(out, ref, atol=2e-3, rtol=2e-3), "mismatch vs reference"

    print("KERNEL_OK")
</pallas_src>

<mosaic_0001>
module attributes {stable_mosaic.version = 11 : i64} {
  func.func @_spatial_attn_kernel(%arg0: i32, %arg1: memref<2x16x4xf32, #tpu.memory_space<vmem>>, %arg2: memref<16x16xf32, #tpu.memory_space<vmem>>, %arg3: memref<4x8xf32, #tpu.memory_space<vmem>>, %arg4: memref<1x8xf32, #tpu.memory_space<vmem>>, %arg5: memref<4x8xf32, #tpu.memory_space<vmem>>, %arg6: memref<1x8xf32, #tpu.memory_space<vmem>>, %arg7: memref<4x8xf32, #tpu.memory_space<vmem>>, %arg8: memref<1x2x128xf32, #tpu.memory_space<vmem>>) attributes {dimension_semantics = [#tpu.dimension_semantics<parallel>], iteration_bounds = array<i64: 4>, scalar_prefetch = 0 : i64, scratch_operands = 0 : i64, tpu.core_type = #tpu.core_type<tc>, window_params = [{transform_indices = @transform_0, window_bounds = array<i64: 2, 16, 4>}, {pipeline_mode = #tpu.pipeline_mode<synchronous>, transform_indices = @transform_1, window_bounds = array<i64: 16, 16>}, {pipeline_mode = #tpu.pipeline_mode<synchronous>, transform_indices = @transform_2, window_bounds = array<i64: 4, 8>}, {pipeline_mode = #tpu.pipeline_mode<synchronous>, transform_indices = @transform_3, window_bounds = array<i64: 1, 8>}, {pipeline_mode = #tpu.pipeline_mode<synchronous>, transform_indices = @transform_4, window_bounds = array<i64: 4, 8>}, {pipeline_mode = #tpu.pipeline_mode<synchronous>, transform_indices = @transform_5, window_bounds = array<i64: 1, 8>}, {pipeline_mode = #tpu.pipeline_mode<synchronous>, transform_indices = @transform_6, window_bounds = array<i64: 4, 8>}, {transform_indices = @transform_7, window_bounds = array<i64: 1, 2, 128>}]} {
    %c0 = arith.constant 0 : index
    %c0_0 = arith.constant 0 : index
    %c0_1 = arith.constant 0 : index
    %0 = vector.load %arg1[%c0, %c0_0, %c0_1] : memref<2x16x4xf32, #tpu.memory_space<vmem>>, vector<2x16x4xf32>
    %1 = vector.shape_cast %0 : vector<2x16x4xf32> to vector<32x4xf32>
    %c0_2 = arith.constant 0 : index
    %c0_3 = arith.constant 0 : index
    %2 = vector.load %arg2[%c0_2, %c0_3] : memref<16x16xf32, #tpu.memory_space<vmem>>, vector<16x16xf32>
    %c0_4 = arith.constant 0 : index
    %c0_5 = arith.constant 0 : index
    %3 = vector.load %arg3[%c0_4, %c0_5] : memref<4x8xf32, #tpu.memory_space<vmem>>, vector<4x8xf32>
    %cst = arith.constant dense<0.000000e+00> : vector<32x8xf32>
    %4 = tpu.matmul %1, %3, %cst {dimension_numbers = #tpu.dot_dimension_numbers<[1], [0], [0], [1], [0, 0, 1, 1], [], []>} : vector<32x4xf32>, vector<4x8xf32>, vector<32x8xf32> -> vector<32x8xf32>
    %c0_6 = arith.constant 0 : index
    %c0_7 = arith.constant 0 : index
    %5 = vector.load %arg4[%c0_6, %c0_7] : memref<1x8xf32, #tpu.memory_space<vmem>>, vector<1x8xf32>
    %6 = vector.broadcast %5 : vector<1x8xf32> to vector<32x8xf32>
    %7 = arith.addf %4, %6 : vector<32x8xf32>
    %8 = vector.shape_cast %7 : vector<32x8xf32> to vector<2x16x8xf32>
    %c0_8 = arith.constant 0 : index
    %c0_9 = arith.constant 0 : index
    %9 = vector.load %arg5[%c0_8, %c0_9] : memref<4x8xf32, #tpu.memory_space<vmem>>, vector<4x8xf32>
    %cst_10 = arith.constant dense<0.000000e+00> : vector<32x8xf32>
    %10 = tpu.matmul %1, %9, %cst_10 {dimension_numbers = #tpu.dot_dimension_numbers<[1], [0], [0], [1], [0, 0, 1, 1], [], []>} : vector<32x4xf32>, vector<4x8xf32>, vector<32x8xf32> -> vector<32x8xf32>
    %c0_11 = arith.constant 0 : index
    %c0_12 = arith.constant 0 : index
    %11 = vector.load %arg6[%c0_11, %c0_12] : memref<1x8xf32, #tpu.memory_space<vmem>>, vector<1x8xf32>
    %12 = vector.broadcast %11 : vector<1x8xf32> to vector<32x8xf32>
    %13 = arith.addf %10, %12 : vector<32x8xf32>
    %14 = vector.shape_cast %13 : vector<32x8xf32> to vector<2x16x8xf32>
    "tpu.trace_start"() <{level = 10 : i32, message = "bnc,bmc->bnm"}> : () -> ()
    %cst_13 = arith.constant dense<0.000000e+00> : vector<2x16x16xf32>
    %15 = tpu.matmul %8, %14, %cst_13 {dimension_numbers = #tpu.dot_dimension_numbers<[2], [2], [1], [1], [0, 0, 0, 1, 1, 1], [0], [0]>} : vector<2x16x8xf32>, vector<2x16x8xf32>, vector<2x16x16xf32> -> vector<2x16x16xf32>
    "tpu.trace_stop"() : () -> ()
    %cst_14 = arith.constant dense<0xFF800000> : vector<2x16xf32>
    %16 = vector.multi_reduction <maximumf>, %15, %cst_14 [1] : vector<2x16x16xf32> to vector<2x16xf32>
    %17 = vector.shape_cast %16 : vector<2x16xf32> to vector<2x1x16xf32>
    %18 = vector.broadcast %17 : vector<2x1x16xf32> to vector<2x16x16xf32>
    %19 = arith.subf %15, %18 : vector<2x16x16xf32>
    %20 = math.exp %19 : vector<2x16x16xf32>
    %cst_15 = arith.constant dense<0.000000e+00> : vector<2x16xf32>
    %21 = vector.multi_reduction <add>, %20, %cst_15 [1] : vector<2x16x16xf32> to vector<2x16xf32>
    %22 = vector.shape_cast %21 : vector<2x16xf32> to vector<2x1x16xf32>
    %23 = tpu.reciprocal %22 {approx = true} : vector<2x1x16xf32> -> vector<2x1x16xf32>
    %24 = vector.broadcast %23 : vector<2x1x16xf32> to vector<2x16x16xf32>
    %25 = arith.mulf %20, %24 : vector<2x16x16xf32>
    %26 = tpu.transpose %0, [0, 2, 1] : vector<2x16x4xf32> -> vector<2x4x16xf32>
    %27 = vector.shape_cast %26 : vector<2x4x16xf32> to vector<8x16xf32>
    "tpu.trace_start"() <{level = 10 : i32, message = "rm,nm->rn"}> : () -> ()
    %cst_16 = arith.constant dense<0.000000e+00> : vector<8x16xf32>
    %28 = tpu.matmul %27, %2, %cst_16 {dimension_numbers = #tpu.dot_dimension_numbers<[1], [1], [0], [0], [0, 0, 1, 0], [], []>} : vector<8x16xf32>, vector<16x16xf32>, vector<8x16xf32> -> vector<8x16xf32>
    "tpu.trace_stop"() : () -> ()
    %29 = vector.shape_cast %28 : vector<8x16xf32> to vector<2x4x16xf32>
    %30 = tpu.transpose %29, [0, 2, 1] : vector<2x4x16xf32> -> vector<2x16x4xf32>
    %31 = vector.shape_cast %30 : vector<2x16x4xf32> to vector<32x4xf32>
    %c0_17 = arith.constant 0 : index
    %c0_18 = arith.constant 0 : index
    %32 = vector.load %arg7[%c0_17, %c0_18] : memref<4x8xf32, #tpu.memory_space<vmem>>, vector<4x8xf32>
    %cst_19 = arith.constant dense<0.000000e+00> : vector<32x8xf32>
    %33 = tpu.matmul %31, %32, %cst_19 {dimension_numbers = #tpu.dot_dimension_numbers<[1], [0], [0], [1], [0, 0, 1, 1], [], []>} : vector<32x4xf32>, vector<4x8xf32>, vector<32x8xf32> -> vector<32x8xf32>
    %34 = vector.shape_cast %33 : vector<32x8xf32> to vector<2x16x8xf32>
    "tpu.trace_start"() <{level = 10 : i32, message = "bnm,bmc->bnc"}> : () -> ()
    %cst_20 = arith.constant dense<0.000000e+00> : vector<2x16x8xf32>
    %35 = tpu.matmul %25, %34, %cst_20 {dimension_numbers = #tpu.dot_dimension_numbers<[2], [1], [1], [2], [0, 0, 0, 1, 1, 2], [0], [0]>} : vector<2x16x16xf32>, vector<2x16x8xf32>, vector<2x16x8xf32> -> vector<2x16x8xf32>
    "tpu.trace_stop"() : () -> ()
    %36 = vector.shape_cast %35 : vector<2x16x8xf32> to vector<2x128xf32>
    %c0_21 = arith.constant 0 : index
    %c0_22 = arith.constant 0 : index
    %c0_23 = arith.constant 0 : index
    %37 = vector.load %arg8[%c0_21, %c0_22, %c0_23] : memref<1x2x128xf32, #tpu.memory_space<vmem>>, vector<1x2x128xf32>
    %38 = vector.shape_cast %37 : vector<1x2x128xf32> to vector<2x128xf32>
    %39 = vector.shape_cast %36 : vector<2x128xf32> to vector<1x2x128xf32>
    tpu.vector_store %arg8[%c0_21, %c0_22, %c0_23], %39 {strides = array<i32>} : memref<1x2x128xf32, #tpu.memory_space<vmem>>, vector<1x2x128xf32>,
    return
  }
  func.func @transform_0(%arg0: i32) -> (i32, i32, i32) {
    %c0_i32 = arith.constant 0 : i32
    %c0_i32_0 = arith.constant 0 : i32
    %c0_i32_1 = arith.constant 0 : i32
    return %arg0, %c0_i32, %c0_i32_0 : i32, i32, i32
  }
  func.func @transform_1(%arg0: i32) -> (i32, i32) {
    %c0_i32 = arith.constant 0 : i32
    %c0_i32_0 = arith.constant 0 : i32
    %c0_i32_1 = arith.constant 0 : i32
    return %c0_i32, %c0_i32_0 : i32, i32
  }
  func.func @transform_2(%arg0: i32) -> (i32, i32) {
    %c0_i32 = arith.constant 0 : i32
    %c0_i32_0 = arith.constant 0 : i32
    %c0_i32_1 = arith.constant 0 : i32
    return %c0_i32, %c0_i32_0 : i32, i32
  }
  func.func @transform_3(%arg0: i32) -> (i32, i32) {
    %c0_i32 = arith.constant 0 : i32
    %c0_i32_0 = arith.constant 0 : i32
    %c0_i32_1 = arith.constant 0 : i32
    return %c0_i32, %c0_i32_0 : i32, i32
  }
  func.func @transform_4(%arg0: i32) -> (i32, i32) {
    %c0_i32 = arith.constant 0 : i32
    %c0_i32_0 = arith.constant 0 : i32
    %c0_i32_1 = arith.constant 0 : i32
    return %c0_i32, %c0_i32_0 : i32, i32
  }
  func.func @transform_5(%arg0: i32) -> (i32, i32) {
    %c0_i32 = arith.constant 0 : i32
    %c0_i32_0 = arith.constant 0 : i32
    %c0_i32_1 = arith.constant 0 : i32
    return %c0_i32, %c0_i32_0 : i32, i32
  }
  func.func @transform_6(%arg0: i32) -> (i32, i32) {
    %c0_i32 = arith.constant 0 : i32
    %c0_i32_0 = arith.constant 0 : i32
    %c0_i32_1 = arith.constant 0 : i32
    return %c0_i32, %c0_i32_0 : i32, i32
  }
  func.func @transform_7(%arg0: i32) -> (i32, i32, i32) {
    %c0_i32 = arith.constant 0 : i32
    %c0_i32_0 = arith.constant 0 : i32
    %c0_i32_1 = arith.constant 0 : i32
    return %arg0, %c0_i32, %c0_i32_0 : i32, i32, i32
  }
}

</mosaic_0001>

<llo_original>
// kernel: tpu_custom_call.1
$region0: #{tpu_custom_call.1}
  #allocation0 [shape = 'u32[]', space=smem, size = 0x4, offset = 0x4, fixed_abs, tag = 'smem constant byte address 0x4 - core index']
  #allocation1 [shape = 'u32[72,128]{1,0:T(1,128)}', space=vmem, size = 0x9000, scoped, tag = 'internal scratch']
  %s0 = inlined_call_operand.vmem [shape: f32[8,16,4], index: 0, kind: input, shape index: {}]
  %s1 = inlined_call_operand.vmem [shape: f32[16,16], index: 1, kind: input, shape index: {}]
  %s2 = inlined_call_operand.vmem [shape: f32[4,8], index: 2, kind: input, shape index: {}]
  %s3 = inlined_call_operand.vmem [shape: f32[1,8], index: 3, kind: input, shape index: {}]
  %s4 = inlined_call_operand.vmem [shape: f32[4,8], index: 4, kind: input, shape index: {}]
  %s5 = inlined_call_operand.vmem [shape: f32[1,8], index: 5, kind: input, shape index: {}]
  %s6 = inlined_call_operand.vmem [shape: f32[4,8], index: 6, kind: input, shape index: {}]
  %s7 = inlined_call_operand.hbm [shape: f32[4,2,128], index: 7, kind: output, shape index: {}]
  %s8 = sld [smem:[#allocation0]]
  $region61: #{tpu_custom_call.1} parent=0
    _
  %s10 = ssub.s32 1, %s8
  %s11 = scalar_select 0, %s10, %s8
  $region1: #{tpu_custom_call.1} parent=0
    #allocation2 [shape = 'u8[2048]{0}', space=vmem, size = 0x800, scoped, tag = 'output window, operand 0']
    #allocation3 [shape = 's32[2]{0}', space=sflag, size = 0x8, scoped, tag = 'scoped memory for tpu_custom_call.1']
    %12 = vsyncpa [#allocation3], 0
    %s13 = scalar_lea.sflag [#allocation3], 1
    %14 = vsyncpa %s13, 0
    loop: start=0, step=1, limit=6
    $region2: #{tpu_custom_call.1} parent=1 // loop_pre_header
      _
    $region3: #{tpu_custom_call.1} parent=1 // loop_header
      %s16 = sphi 0, %s20
      %p17 = scmp.ge.s32.totalorder %s16, 6
      %s26 = sphi 0, %s28
      %s29 = sphi 0, %s26
      %s30 = sphi 0, %s29
      %s46 = sphi 0, %s30
      %s50 = sphi 0, %s50
      %s52 = sphi 0, %s50
      %s53 = sphi 0, %s52
      %s67 = sphi 0, %s53
      %s71 = sphi 0, %s71
      %s73 = sphi 0, %s71
      %s74 = sphi 0, %s73
      %s88 = sphi 0, %s74
      %s92 = sphi 0, %s92
      %s94 = sphi 0, %s92
      %s95 = sphi 0, %s94
      %s109 = sphi 0, %s95
      %s113 = sphi 0, %s113
      %s115 = sphi 0, %s113
      %s116 = sphi 0, %s115
      %s130 = sphi 0, %s116
      %s134 = sphi 0, %s134
      %s136 = sphi 0, %s134
      %s137 = sphi 0, %s136
      %s151 = sphi 0, %s137
      %s155 = sphi 0, %s155
      %s157 = sphi 0, %s155
      %s158 = sphi 0, %s157
      %s172 = sphi 0, %s158
      %s178 = sphi 0, %s180
      %s181 = sphi 0, %s178
      %s182 = sphi 0, %s181
      %s198 = sphi 0, %s182
    $region4: #{tpu_custom_call.1} parent=1 // loop_header_branch
      %19 = sbr.rel (%p17) target = $region8
    $region5: #{tpu_custom_call.1} parent=1 // loop_body
      %s21 = ssub.s32 %s16, 1
      %s22 = ssub.s32 %s16, 2
      %s23 = sadd.s32 %s16, 1
      %s24 = ssub.s32 %s16, %s23
      %p25 = scmp.eq.s32.totalorder %s24, 0
      %s27 = sadd.s32 %s26, 1
      %s28 = scalar_select %p25, %s26, %s27
      %p31 = pneg %p25
      %p32 = scmp.eq.s32.totalorder %s16, 3
      %p33 = por %p31, %p32
      %p34 = scmp.ne.s32.totalorder %s26, %s29
      %p35 = scmp.eq.s32.totalorder %s16, 0
      %p36 = por %p34, %p35
      %p37 = scmp.ne.s32.totalorder %s26, %s29
      %p38 = scmp.eq.s32.totalorder %s21, 3
      %p39 = por %p37, %p38
      %p40 = scmp.ne.s32.totalorder %s29, %s30
      %p41 = scmp.eq.s32.totalorder %s21, 0
      %p42 = por %p40, %p41
      %p43 = scmp.ne.s32.totalorder %s29, %s30
      %p44 = scmp.eq.s32.totalorder %s22, 3
      %p45 = por %p43, %p44
      %p47 = scmp.ne.s32.totalorder %s30, %s46
      %p48 = scmp.eq.s32.totalorder %s22, 0
      %p49 = por %p47, %p48
      %s51 = sadd.s32 %s50, 1
      %p54 = scmp.eq.s32.totalorder %s16, 3
      %p55 = scmp.ne.s32.totalorder %s50, %s52
      %p56 = scmp.eq.s32.totalorder %s16, 0
      %p57 = por %p55, %p56
      %p58 = scmp.ne.s32.totalorder %s50, %s52
      %p59 = scmp.eq.s32.totalorder %s21, 3
      %p60 = por %p58, %p59
      %p61 = scmp.ne.s32.totalorder %s52, %s53
      %p62 = scmp.eq.s32.totalorder %s21, 0
      %p63 = por %p61, %p62
      %p64 = scmp.ne.s32.totalorder %s52, %s53
      %p65 = scmp.eq.s32.totalorder %s22, 3
      %p66 = por %p64, %p65
      %p68 = scmp.ne.s32.totalorder %s53, %s67
      %p69 = scmp.eq.s32.totalorder %s22, 0
      %p70 = por %p68, %p69
      %s72 = sadd.s32 %s71, 1
      %p75 = scmp.eq.s32.totalorder %s16, 3
      %p76 = scmp.ne.s32.totalorder %s71, %s73
      %p77 = scmp.eq.s32.totalorder %s16, 0
      %p78 = por %p76, %p77
      %p79 = scmp.ne.s32.totalorder %s71, %s73
      %p80 = scmp.eq.s32.totalorder %s21, 3
      %p81 = por %p79, %p80
      %p82 = scmp.ne.s32.totalorder %s73, %s74
      %p83 = scmp.eq.s32.totalorder %s21, 0
      %p84 = por %p82, %p83
      %p85 = scmp.ne.s32.totalorder %s73, %s74
      %p86 = scmp.eq.s32.totalorder %s22, 3
      %p87 = por %p85, %p86
      %p89 = scmp.ne.s32.totalorder %s74, %s88
      %p90 = scmp.eq.s32.totalorder %s22, 0
      %p91 = por %p89, %p90
      %s93 = sadd.s32 %s92, 1
      %p96 = scmp.eq.s32.totalorder %s16, 3
      %p97 = scmp.ne.s32.totalorder %s92, %s94
      %p98 = scmp.eq.s32.totalorder %s16, 0
      %p99 = por %p97, %p98
      %p100 = scmp.ne.s32.totalorder %s92, %s94
      %p101 = scmp.eq.s32.totalorder %s21, 3
      %p102 = por %p100, %p101
      %p103 = scmp.ne.s32.totalorder %s94, %s95
      %p104 = scmp.eq.s32.totalorder %s21, 0
      %p105 = por %p103, %p104
      %p106 = scmp.ne.s32.totalorder %s94, %s95
      %p107 = scmp.eq.s32.totalorder %s22, 3
      %p108 = por %p106, %p107
      %p110 = scmp.ne.s32.totalorder %s95, %s109
      %p111 = scmp.eq.s32.totalorder %s22, 0
      %p112 = por %p110, %p111
      %s114 = sadd.s32 %s113, 1
      %p117 = scmp.eq.s32.totalorder %s16, 3
      %p118 = scmp.ne.s32.totalorder %s113, %s115
      %p119 = scmp.eq.s32.totalorder %s16, 0
      %p120 = por %p118, %p119
      %p121 = scmp.ne.s32.totalorder %s113, %s115
      %p122 = scmp.eq.s32.totalorder %s21, 3
      %p123 = por %p121, %p122
      %p124 = scmp.ne.s32.totalorder %s115, %s116
      %p125 = scmp.eq.s32.totalorder %s21, 0
      %p126 = por %p124, %p125
      %p127 = scmp.ne.s32.totalorder %s115, %s116
      %p128 = scmp.eq.s32.totalorder %s22, 3
      %p129 = por %p127, %p128
      %p131 = scmp.ne.s32.totalorder %s116, %s130
      %p132 = scmp.eq.s32.totalorder %s22, 0
      %p133 = por %p131, %p132
      %s135 = sadd.s32 %s134, 1
      %p138 = scmp.eq.s32.totalorder %s16, 3
      %p139 = scmp.ne.s32.totalorder %s134, %s136
      %p140 = scmp.eq.s32.totalorder %s16, 0
      %p141 = por %p139, %p140
      %p142 = scmp.ne.s32.totalorder %s134, %s136
      %p143 = scmp.eq.s32.totalorder %s21, 3
      %p144 = por %p142, %p143
      %p145 = scmp.ne.s32.totalorder %s136, %s137
      %p146 = scmp.eq.s32.totalorder %s21, 0
      %p147 = por %p145, %p146
      %p148 = scmp.ne.s32.totalorder %s136, %s137
      %p149 = scmp.eq.s32.totalorder %s22, 3
      %p150 = por %p148, %p149
      %p152 = scmp.ne.s32.totalorder %s137, %s151
      %p153 = scmp.eq.s32.totalorder %s22, 0
      %p154 = por %p152, %p153
      %s156 = sadd.s32 %s155, 1
      %p159 = scmp.eq.s32.totalorder %s16, 3
      %p160 = scmp.ne.s32.totalorder %s155, %s157
      %p161 = scmp.eq.s32.totalorder %s16, 0
      %p162 = por %p160, %p161
      %p163 = scmp.ne.s32.totalorder %s155, %s157
      %p164 = scmp.eq.s32.totalorder %s21, 3
      %p165 = por %p163, %p164
      %p166 = scmp.ne.s32.totalorder %s157, %s158
      %p167 = scmp.eq.s32.totalorder %s21, 0
      %p168 = por %p166, %p167
      %p169 = scmp.ne.s32.totalorder %s157, %s158
      %p170 = scmp.eq.s32.totalorder %s22, 3
      %p171 = por %p169, %p170
      %p173 = scmp.ne.s32.totalorder %s158, %s172
      %p174 = scmp.eq.s32.totalorder %s22, 0
      %p175 = por %p173, %p174
      %s176 = ssub.s32 %s16, %s23
      %p177 = scmp.eq.s32.totalorder %s176, 0
      %s179 = sadd.s32 %s178, 1
      %s180 = scalar_select %p177, %s178, %s179
      %p183 = pneg %p177
      %p184 = scmp.eq.s32.totalorder %s16, 3
      %p185 = por %p183, %p184
      %p186 = scmp.ne.s32.totalorder %s178, %s181
      %p187 = scmp.eq.s32.totalorder %s16, 0
      %p188 = por %p186, %p187
      %p189 = scmp.ne.s32.totalorder %s178, %s181
      %p190 = scmp.eq.s32.totalorder %s21, 3
      %p191 = por %p189, %p190
      %p192 = scmp.ne.s32.totalorder %s181, %s182
      %p193 = scmp.eq.s32.totalorder %s21, 0
      %p194 = por %p192, %p193
      %p195 = scmp.ne.s32.totalorder %s181, %s182
      %p196 = scmp.eq.s32.totalorder %s22, 3
      %p197 = por %p195, %p196
      %p199 = scmp.ne.s32.totalorder %s182, %s198
      %p200 = scmp.eq.s32.totalorder %s22, 0
      %p201 = por %p199, %p200
      %p202 = scmp.le.s32.totalorder 1, %s16
      %p203 = scmp.lt.s32.totalorder %s16, 5
      %p204 = pnand %p202, %p203
      %p205 = pneg %p204
      // Predicated region
      $region9: #{tpu_custom_call.1} parent=5 // pred_check
        _
      $region10: #{tpu_custom_call.1} parent=5 // pred_check_branch
        %207 = sbr.rel (%p204) target = $region12
      $region11: #{tpu_custom_call.1} parent=5 // pred_region
        %s208 = ssub.s32 %s16, 1
        // Predicated region
        $region13: #{tpu_custom_call.1} parent=11 // pred_check
          %p209 = pneg %p63
        $region14: #{tpu_custom_call.1} parent=11 // pred_check_branch
          %211 = sbr.rel (%p209) target = $region16
        $region15: #{tpu_custom_call.1} parent=11 // pred_region
          _
        $region16: #{tpu_custom_call.1} parent=11 // pred_fallthru
          _
        // Predicated region
        $region17: #{tpu_custom_call.1} parent=11 // pred_check
          %p212 = pneg %p84
        $region18: #{tpu_custom_call.1} parent=11 // pred_check_branch
          %214 = sbr.rel (%p212) target = $region20
        $region19: #{tpu_custom_call.1} parent=11 // pred_region
          _
        $region20: #{tpu_custom_call.1} parent=11 // pred_fallthru
          _
        // Predicated region
        $region21: #{tpu_custom_call.1} parent=11 // pred_check
          %p215 = pneg %p105
        $region22: #{tpu_custom_call.1} parent=11 // pred_check_branch
          %217 = sbr.rel (%p215) target = $region24
        $region23: #{tpu_custom_call.1} parent=11 // pred_region
          _
        $region24: #{tpu_custom_call.1} parent=11 // pred_fallthru
          _
        // Predicated region
        $region25: #{tpu_custom_call.1} parent=11 // pred_check
          %p218 = pneg %p126
        $region26: #{tpu_custom_call.1} parent=11 // pred_check_branch
          %220 = sbr.rel (%p218) target = $region28
        $region27: #{tpu_custom_call.1} parent=11 // pred_region
          _
        $region28: #{tpu_custom_call.1} parent=11 // pred_fallthru
          _
        // Predicated region
        $region29: #{tpu_custom_call.1} parent=11 // pred_check
          %p221 = pneg %p147
        $region30: #{tpu_custom_call.1} parent=11 // pred_check_branch
          %223 = sbr.rel (%p221) target = $region32
        $region31: #{tpu_custom_call.1} parent=11 // pred_region
          _
        $region32: #{tpu_custom_call.1} parent=11 // pred_fallthru
          _
        // Predicated region
        $region33: #{tpu_custom_call.1} parent=11 // pred_check
          %p224 = pneg %p168
        $region34: #{tpu_custom_call.1} parent=11 // pred_check_branch
          %226 = sbr.rel (%p224) target = $region36
        $region35: #{tpu_custom_call.1} parent=11 // pred_region
          _
        $region36: #{tpu_custom_call.1} parent=11 // pred_fallthru
          _
      $region12: #{tpu_custom_call.1} parent=5 // pred_fallthru
        _
      %p227 = scmp.lt.s32.totalorder %s16, 4
      // Predicated region
      $region37: #{tpu_custom_call.1} parent=5 // pred_check
        %p228 = pneg %p227
      $region38: #{tpu_custom_call.1} parent=5 // pred_check_branch
        %230 = sbr.rel (%p228) target = $region40
      $region39: #{tpu_custom_call.1} parent=5 // pred_region
        // Predicated region
        $region41: #{tpu_custom_call.1} parent=39 // pred_check
          %p231 = pneg %p36
        $region42: #{tpu_custom_call.1} parent=39 // pred_check_branch
          %233 = sbr.rel (%p231) target = $region44
        $region43: #{tpu_custom_call.1} parent=39 // pred_region
          %s234 = smul.u32 2, %s16
          %p235 = scmp.lt.s32.totalorder %s234, 7
          %s236 = scalar_select %p235, %s234, 7
          %s237 = smul.addr %s236, 2
          %s238 = smul.addr %s237, 8
          %s239 = scalar_lea.vmem %s0, %s238
          %s240 = smul.u32 2, %s16
        $region44: #{tpu_custom_call.1} parent=39 // pred_fallthru
          _
      $region40: #{tpu_custom_call.1} parent=5 // pred_fallthru
        _
      %p241 = scmp.le.s32.totalorder 1, %s16
      %p242 = scmp.lt.s32.totalorder %s16, 5
      %p243 = pnand %p241, %p242
      %p244 = pneg %p243
      // Predicated region
      $region45: #{tpu_custom_call.1} parent=5 // pred_check
        _
      $region46: #{tpu_custom_call.1} parent=5 // pred_check_branch
        %246 = sbr.rel (%p243) target = $region48
      $region47: #{tpu_custom_call.1} parent=5 // pred_region
        %s247 = ssub.s32 %s16, 1
        %s248 = smul.u32 2, %s21
        %p249 = scmp.lt.s32.totalorder %s248, 7
        %s250 = scalar_select %p249, %s248, 7
        %s251 = smul.addr %s250, 2
        %s252 = smul.addr %s251, 8
        %s253 = scalar_lea.vmem %s0, %s252
        %p254 = pneg %p42
        %p255 = pneg %p39
        %p256 = pneg %p63
        %p257 = pneg %p60
        %p258 = pneg %p84
        %p259 = pneg %p81
        %p260 = pneg %p105
        %p261 = pneg %p102
        %p262 = pneg %p126
        %p263 = pneg %p123
        %p264 = pneg %p147
        %p265 = pneg %p144
        %p266 = pneg %p168
        %p267 = pneg %p165
        %p268 = pneg %p194
        %p269 = pneg %p191
        %s270 = sand.u32 %s181, 1
        %s271 = scalar_lea.sflag [#allocation3], %s270
        %s272 = sand.u32 %s181, 1
        %s273 = smul.addr %s272, 2
        %s274 = scalar_lea.vmem [#allocation2], %s273
        %s275 = smul.u32 2, %s21
        %p276 = scmp.lt.s32.totalorder %s275, 7
        %s277 = scalar_select %p276, %s275, 7
        %s278 = smul.addr %s277, 2
        %s279 = smul.addr %s278, 8
        %s280 = scalar_lea.vmem %s0, %s279
        %s281 = smul.u32 2, %s21
        %v282 = vld [vmem:[%s280] sm:$0xff]
        %v283 = vld [vmem:[%s280 + $0x8] sm:$0xff]
        %v284 = vld [vmem:[%s280 + $0x10] sm:$0xff]
        %v285 = vld [vmem:[%s280 + $0x18] sm:$0xff]
        %v286 = vld [vmem:[%s1] sm:$0xff]
        %v287 = vld [vmem:[%s1 + $0x8] sm:$0xff]
        %v288 = vld [vmem:[%s2] sm:$0xf]
        %v289 = vld [vmem:[%s3] sm:$0x1]
        %v291 = vperm.slane %v289, 0
        %vm293 = vcmask 31744
        %v295 = vsel %vm293, %v282, 0
        %v298 = vsel %vm293, %v283, 0
        %v301 = vsel %vm293, %v284, 0
        %v304 = vsel %vm293, %v285, 0
        %vm306 = vcmask 1043456
        %v308 = vsel %vm306, %v288, 0
        %310 = vmatpush.msra.mxu0 0.0
        %311 = vmatpush.msra.mxu0 0.0
        %312 = vmatpush.msra.mxu0 0.0
        %313 = vmatpush.msra.mxu0 0.0
        %314 = vmatpush.msra.mxu0 0.0
        %315 = vmatpush.msra.mxu0 0.0
        %316 = vmatpush.msra.mxu0 0.0
        %317 = vmatpush.msra.mxu0 0.0
        %318 = vmatpush.msra.mxu0 0.0
        %319 = vmatpush.msra.mxu0 0.0
        %320 = vmatpush.msra.mxu0 0.0
        %321 = vmatpush.msra.mxu0 0.0
        %322 = vmatpush.msra.mxu0 0.0
        %323 = vmatpush.msra.mxu0 0.0
        %324 = vmatpush.msra.mxu0 0.0
        %325 = vmatpush.msra.mxu0 %v308
        %326 = vmatmul.f32.gmra.mxu0 %v295
        %v327 = vpop.f32.mrf.mxu0
        %v328 = vadd.f32 %v291, %v327
        %329 = vmatmul.f32.gmra.mxu0 %v298
        %v330 = vpop.f32.mrf.mxu0
        %v331 = vadd.f32 %v291, %v330
        %332 = vmatmul.f32.gmra.mxu0 %v301
        %v333 = vpop.f32.mrf.mxu0
        %v334 = vadd.f32 %v291, %v333
        %335 = vmatmul.f32.gmra.mxu0 %v304
        %v336 = vpop.f32.mrf.mxu0
        %v337 = vadd.f32 %v291, %v336
        %338 = vdwg.mxu0
        %v339 = vld [vmem:[%s4] sm:$0xf]
        %v340 = vld [vmem:[%s5] sm:$0x1]
        %v342 = vperm.slane %v340, 0
        %v345 = vsel %vm306, %v339, 0
        %347 = vmatpush.msra.mxu0 0.0
        %348 = vmatpush.msra.mxu0 0.0
        %349 = vmatpush.msra.mxu0 0.0
        %350 = vmatpush.msra.mxu0 0.0
        %351 = vmatpush.msra.mxu0 0.0
        %352 = vmatpush.msra.mxu0 0.0
        %353 = vmatpush.msra.mxu0 0.0
        %354 = vmatpush.msra.mxu0 0.0
        %355 = vmatpush.msra.mxu0 0.0
        %356 = vmatpush.msra.mxu0 0.0
        %357 = vmatpush.msra.mxu0 0.0
        %358 = vmatpush.msra.mxu0 0.0
        %359 = vmatpush.msra.mxu0 0.0
        %360 = vmatpush.msra.mxu0 0.0
        %361 = vmatpush.msra.mxu0 0.0
        %362 = vmatpush.msra.mxu0 %v345
        %363 = vmatmul.f32.gmra.mxu0 %v295
        %v364 = vpop.f32.mrf.mxu0
        %v365 = vadd.f32 %v342, %v364
        %366 = vmatmul.f32.gmra.mxu0 %v298
        %v367 = vpop.f32.mrf.mxu0
        %v368 = vadd.f32 %v342, %v367
        %369 = vmatmul.f32.gmra.mxu0 %v301
        %v370 = vpop.f32.mrf.mxu0
        %v371 = vadd.f32 %v342, %v370
        %372 = vmatmul.f32.gmra.mxu0 %v304
        %v373 = vpop.f32.mrf.mxu0
        %v374 = vadd.f32 %v342, %v373
        %375 = vdwg.mxu0
        %vm376 = vcmask 64512
        %v378 = vsel %vm376, %v328, 0
        %v381 = vsel %vm376, %v331, 0
        %v384 = vsel %vm376, %v365, 0
        %v387 = vsel %vm376, %v368, 0
        %389 = vmatpush.xpose.msra.mxu0 0.0
        %390 = vmatpush.xpose.msra.mxu0 0.0
        %391 = vmatpush.xpose.msra.mxu0 0.0
        %392 = vmatpush.xpose.msra.mxu0 0.0
        %393 = vmatpush.xpose.msra.mxu0 0.0
        %394 = vmatpush.xpose.msra.mxu0 0.0
        %395 = vmatpush.xpose.msra.mxu0 0.0
        %396 = vmatpush.xpose.msra.mxu0 0.0
        %397 = vmatpush.xpose.msra.mxu0 0.0
        %398 = vmatpush.xpose.msra.mxu0 0.0
        %399 = vmatpush.xpose.msra.mxu0 0.0
        %400 = vmatpush.xpose.msra.mxu0 0.0
        %401 = vmatpush.xpose.msra.mxu0 0.0
        %402 = vmatpush.xpose.msra.mxu0 0.0
        %403 = vmatpush.xpose.msra.mxu0 %v387
        %404 = vmatpush.xpose.msra.mxu0 %v384
        %405 = vmatmul.f32.gmra.mxu0 %v378
        %v406 = vpop.f32.mrf.mxu0
        %v407 = vadd.f32 0.0, %v406
        %408 = vmatmul.f32.gmra.mxu0 %v381
        %v409 = vpop.f32.mrf.mxu0
        %v410 = vadd.f32 0.0, %v409
        %411 = vdwg.mxu0
        %v413 = vsel %vm376, %v334, 0
        %v416 = vsel %vm376, %v337, 0
        %v419 = vsel %vm376, %v371, 0
        %v422 = vsel %vm376, %v374, 0
        %424 = vmatpush.xpose.msra.mxu0 0.0
        %425 = vmatpush.xpose.msra.mxu0 0.0
        %426 = vmatpush.xpose.msra.mxu0 0.0
        %427 = vmatpush.xpose.msra.mxu0 0.0
        %428 = vmatpush.xpose.msra.mxu0 0.0
        %429 = vmatpush.xpose.msra.mxu0 0.0
        %430 = vmatpush.xpose.msra.mxu0 0.0
        %431 = vmatpush.xpose.msra.mxu0 0.0
        %432 = vmatpush.xpose.msra.mxu0 0.0
        %433 = vmatpush.xpose.msra.mxu0 0.0
        %434 = vmatpush.xpose.msra.mxu0 0.0
        %435 = vmatpush.xpose.msra.mxu0 0.0
        %436 = vmatpush.xpose.msra.mxu0 0.0
        %437 = vmatpush.xpose.msra.mxu0 0.0
        %438 = vmatpush.xpose.msra.mxu0 %v422
        %439 = vmatpush.xpose.msra.mxu0 %v419
        %440 = vmatmul.f32.gmra.mxu0 %v413
        %v441 = vpop.f32.mrf.mxu0
        %v442 = vadd.f32 0.0, %v441
        %443 = vmatmul.f32.gmra.mxu0 %v416
        %v444 = vpop.f32.mrf.mxu0
        %v445 = vadd.f32 0.0, %v444
        %446 = vdwg.mxu0
        %vm447 = vcmask 130048
        %v448 = vsel %vm447, %v407, -inf
        %v449 = vsel %vm447, %v410, -inf
        %v450 = vmax.f32 %v448, %v449
        %v451 = vrot.slane %v450, 4
        %v452 = vmax.f32 %v450, %v451
        %v453 = vrot.slane %v452, 2
        %v454 = vmax.f32 %v452, %v453
        %v455 = vrot.slane %v454, 1
        %v456 = vmax.f32 %v454, %v455
        %v457 = vsel %vm447, %v442, -inf
        %v458 = vsel %vm447, %v445, -inf
        %v459 = vmax.f32 %v457, %v458
        %v460 = vrot.slane %v459, 4
        %v461 = vmax.f32 %v459, %v460
        %v462 = vrot.slane %v461, 2
        %v463 = vmax.f32 %v461, %v462
        %v464 = vrot.slane %v463, 1
        %v465 = vmax.f32 %v463, %v464
        %v466 = vsub.f32 %v407, %v456
        %v467 = vsub.f32 %v410, %v456
        %v468 = vsub.f32 %v442, %v465
        %v469 = vsub.f32 %v445, %v465
        %v470 = vmul.f32 %v466, 1.442695
        %v471 = vpow.pop %v470
        %v472 = vmul.f32 %v467, 1.442695
        %v473 = vpow.pop %v472
        %v474 = vmul.f32 %v468, 1.442695
        %v475 = vpow.pop %v474
        %v476 = vmul.f32 %v469, 1.442695
        %v477 = vpow.pop %v476
        %v478 = vsel %vm447, %v471, 0.0
        %v479 = vsel %vm447, %v473, 0.0
        %v480 = vadd.f32 %v478, %v479
        %v481 = vrot.slane %v480, 4
        %v482 = vadd.f32 %v480, %v481
        %v483 = vrot.slane %v482, 2
        %v484 = vadd.f32 %v482, %v483
        %v485 = vrot.slane %v484, 1
        %v486 = vadd.f32 %v484, %v485
        %v487 = vsel %vm447, %v475, 0.0
        %v488 = vsel %vm447, %v477, 0.0
        %v489 = vadd.f32 %v487, %v488
        %v490 = vrot.slane %v489, 4
        %v491 = vadd.f32 %v489, %v490
        %v492 = vrot.slane %v491, 2
        %v493 = vadd.f32 %v491, %v492
        %v494 = vrot.slane %v493, 1
        %v495 = vadd.f32 %v493, %v494
        %v496 = vrcp.pop %v486
        %v497 = vrcp.pop %v495
        %v498 = vmul.f32 %v471, %v496
        %v499 = vmul.f32 %v473, %v496
        %v500 = vmul.f32 %v475, %v497
        %v501 = vmul.f32 %v477, %v497
        %502 = vxpose.xlu0.b32.start [1/16] %v282, 128
        %503 = vxpose.xlu0.b32.cont [2/16] %v283, 128
        %504 = vxpose.xlu0.b32.cont [3/16] 0.0, 128
        %505 = vxpose.xlu0.b32.cont [4/16] 0.0, 128
        %506 = vxpose.xlu0.b32.cont [5/16] 0.0, 128
        %507 = vxpose.xlu0.b32.cont [6/16] 0.0, 128
        %508 = vxpose.xlu0.b32.cont [7/16] 0.0, 128
        %509 = vxpose.xlu0.b32.cont [8/16] 0.0, 128
        %510 = vxpose.xlu0.b32.cont [9/16] 0.0, 128
        %511 = vxpose.xlu0.b32.cont [10/16] 0.0, 128
        %512 = vxpose.xlu0.b32.cont [11/16] 0.0, 128
        %513 = vxpose.xlu0.b32.cont [12/16] 0.0, 128
        %514 = vxpose.xlu0.b32.cont [13/16] 0.0, 128
        %515 = vxpose.xlu0.b32.cont [14/16] 0.0, 128
        %516 = vxpose.xlu0.b32.cont [15/16] 0.0, 128
        %517 = vxpose.xlu0.b32.end [16/16] 0.0, 128
        %v518 = vpop.trf.xlu0
        %v519 = vpop.trf.xlu0
        %v520 = vpop.trf.xlu0
        %v521 = vpop.trf.xlu0
        %v522 = vpop.trf.xlu0
        %v523 = vpop.trf.xlu0
        %v524 = vpop.trf.xlu0
        %v525 = vpop.trf.xlu0
        %v526 = vpop.trf.xlu0
        %v527 = vpop.trf.xlu0
        %v528 = vpop.trf.xlu0
        %v529 = vpop.trf.xlu0
        %v530 = vpop.trf.xlu0
        %v531 = vpop.trf.xlu0
        %v532 = vpop.trf.xlu0
        %v533 = vpop.trf.xlu0
        %534 = vxpose.xlu0.b32.start [1/16] %v284, 128
        %535 = vxpose.xlu0.b32.cont [2/16] %v285, 128
        %536 = vxpose.xlu0.b32.cont [3/16] 0.0, 128
        %537 = vxpose.xlu0.b32.cont [4/16] 0.0, 128
        %538 = vxpose.xlu0.b32.cont [5/16] 0.0, 128
        %539 = vxpose.xlu0.b32.cont [6/16] 0.0, 128
        %540 = vxpose.xlu0.b32.cont [7/16] 0.0, 128
        %541 = vxpose.xlu0.b32.cont [8/16] 0.0, 128
        %542 = vxpose.xlu0.b32.cont [9/16] 0.0, 128
        %543 = vxpose.xlu0.b32.cont [10/16] 0.0, 128
        %544 = vxpose.xlu0.b32.cont [11/16] 0.0, 128
        %545 = vxpose.xlu0.b32.cont [12/16] 0.0, 128
        %546 = vxpose.xlu0.b32.cont [13/16] 0.0, 128
        %547 = vxpose.xlu0.b32.cont [14/16] 0.0, 128
        %548 = vxpose.xlu0.b32.cont [15/16] 0.0, 128
        %549 = vxpose.xlu0.b32.end [16/16] 0.0, 128
        %v550 = vpop.trf.xlu0
        %v551 = vpop.trf.xlu0
        %v552 = vpop.trf.xlu0
        %v553 = vpop.trf.xlu0
        %v554 = vpop.trf.xlu0
        %v555 = vpop.trf.xlu0
        %v556 = vpop.trf.xlu0
        %v557 = vpop.trf.xlu0
        %v558 = vpop.trf.xlu0
        %v559 = vpop.trf.xlu0
        %v560 = vpop.trf.xlu0
        %v561 = vpop.trf.xlu0
        %v562 = vpop.trf.xlu0
        %v563 = vpop.trf.xlu0
        %v564 = vpop.trf.xlu0
        %v565 = vpop.trf.xlu0
        %568 = vst [vmem:[#allocation1] ss:$2 sm:$0xff] %v518
        %s569 = scalar_lea.vmem [#allocation1], 1
        %570 = vst [vmem:[%s569] ss:$2 sm:$0xff] %v550
        %v571 = vld.sshfl [vmem:[#allocation1] sm:$0xff pattern:$0x75316420]
        %v572 = vsel %vm447, %v571, 0
        %v575 = vsel %vm447, %v286, 0
        %v578 = vsel %vm447, %v287, 0
        %580 = vmatpush.xpose.msra.mxu0 0.0
        %581 = vmatpush.xpose.msra.mxu0 0.0
        %582 = vmatpush.xpose.msra.mxu0 0.0
        %583 = vmatpush.xpose.msra.mxu0 0.0
        %584 = vmatpush.xpose.msra.mxu0 0.0
        %585 = vmatpush.xpose.msra.mxu0 0.0
        %586 = vmatpush.xpose.msra.mxu0 0.0
        %587 = vmatpush.xpose.msra.mxu0 0.0
        %588 = vmatpush.xpose.msra.mxu0 0.0
        %589 = vmatpush.xpose.msra.mxu0 0.0
        %590 = vmatpush.xpose.msra.mxu0 0.0
        %591 = vmatpush.xpose.msra.mxu0 0.0
        %592 = vmatpush.xpose.msra.mxu0 0.0
        %593 = vmatpush.xpose.msra.mxu0 0.0
        %594 = vmatpush.xpose.msra.mxu0 %v578
        %595 = vmatpush.xpose.msra.mxu0 %v575
        %596 = vmatmul.f32.gmra.mxu0 %v572
        %v597 = vpop.f32.mrf.mxu0
        %v598 = vadd.f32 0.0, %v597
        %599 = vdwg.mxu0
        %v601 = vrot.slane %v598, 4
        %603 = vxpose.xlu0.b32.start [1/16] %v598, 128
        %604 = vxpose.xlu0.b32.cont [2/16] 0.0, 128
        %605 = vxpose.xlu0.b32.cont [3/16] 0.0, 128
        %606 = vxpose.xlu0.b32.cont [4/16] 0.0, 128
        %607 = vxpose.xlu0.b32.cont [5/16] 0.0, 128
        %608 = vxpose.xlu0.b32.cont [6/16] 0.0, 128
        %609 = vxpose.xlu0.b32.cont [7/16] 0.0, 128
        %610 = vxpose.xlu0.b32.cont [8/16] 0.0, 128
        %611 = vxpose.xlu0.b32.cont [9/16] 0.0, 128
        %612 = vxpose.xlu0.b32.cont [10/16] 0.0, 128
        %613 = vxpose.xlu0.b32.cont [11/16] 0.0, 128
        %614 = vxpose.xlu0.b32.cont [12/16] 0.0, 128
        %615 = vxpose.xlu0.b32.cont [13/16] 0.0, 128
        %616 = vxpose.xlu0.b32.cont [14/16] 0.0, 128
        %617 = vxpose.xlu0.b32.cont [15/16] 0.0, 128
        %618 = vxpose.xlu0.b32.end [16/16] 0.0, 128
        %v619 = vpop.trf.xlu0
        %v620 = vpop.trf.xlu0
        %v621 = vpop.trf.xlu0
        %v622 = vpop.trf.xlu0
        %v623 = vpop.trf.xlu0
        %v624 = vpop.trf.xlu0
        %v625 = vpop.trf.xlu0
        %v626 = vpop.trf.xlu0
        %v627 = vpop.trf.xlu0
        %v628 = vpop.trf.xlu0
        %v629 = vpop.trf.xlu0
        %v630 = vpop.trf.xlu0
        %v631 = vpop.trf.xlu0
        %v632 = vpop.trf.xlu0
        %v633 = vpop.trf.xlu0
        %v634 = vpop.trf.xlu0
        %635 = vxpose.xlu0.b32.start [1/16] %v601, 128
        %636 = vxpose.xlu0.b32.cont [2/16] 0.0, 128
        %637 = vxpose.xlu0.b32.cont [3/16] 0.0, 128
        %638 = vxpose.xlu0.b32.cont [4/16] 0.0, 128
        %639 = vxpose.xlu0.b32.cont [5/16] 0.0, 128
        %640 = vxpose.xlu0.b32.cont [6/16] 0.0, 128
        %641 = vxpose.xlu0.b32.cont [7/16] 0.0, 128
        %642 = vxpose.xlu0.b32.cont [8/16] 0.0, 128
        %643 = vxpose.xlu0.b32.cont [9/16] 0.0, 128
        %644 = vxpose.xlu0.b32.cont [10/16] 0.0, 128
        %645 = vxpose.xlu0.b32.cont [11/16] 0.0, 128
        %646 = vxpose.xlu0.b32.cont [12/16] 0.0, 128
        %647 = vxpose.xlu0.b32.cont [13/16] 0.0, 128
        %648 = vxpose.xlu0.b32.cont [14/16] 0.0, 128
        %649 = vxpose.xlu0.b32.cont [15/16] 0.0, 128
        %650 = vxpose.xlu0.b32.end [16/16] 0.0, 128
        %v651 = vpop.trf.xlu0
        %v652 = vpop.trf.xlu0
        %v653 = vpop.trf.xlu0
        %v654 = vpop.trf.xlu0
        %v655 = vpop.trf.xlu0
        %v656 = vpop.trf.xlu0
        %v657 = vpop.trf.xlu0
        %v658 = vpop.trf.xlu0
        %v659 = vpop.trf.xlu0
        %v660 = vpop.trf.xlu0
        %v661 = vpop.trf.xlu0
        %v662 = vpop.trf.xlu0
        %v663 = vpop.trf.xlu0
        %v664 = vpop.trf.xlu0
        %v665 = vpop.trf.xlu0
        %v666 = vpop.trf.xlu0
        %v667 = vld [vmem:[%s6] sm:$0xf]
        %v669 = vsel %vm293, %v619, 0
        %v672 = vsel %vm293, %v620, 0
        %v675 = vsel %vm293, %v651, 0
        %v678 = vsel %vm293, %v652, 0
        %v681 = vsel %vm306, %v667, 0
        %683 = vmatpush.msra.mxu0 0.0
        %684 = vmatpush.msra.mxu0 0.0
        %685 = vmatpush.msra.mxu0 0.0
        %686 = vmatpush.msra.mxu0 0.0
        %687 = vmatpush.msra.mxu0 0.0
        %688 = vmatpush.msra.mxu0 0.0
        %689 = vmatpush.msra.mxu0 0.0
        %690 = vmatpush.msra.mxu0 0.0
        %691 = vmatpush.msra.mxu0 0.0
        %692 = vmatpush.msra.mxu0 0.0
        %693 = vmatpush.msra.mxu0 0.0
        %694 = vmatpush.msra.mxu0 0.0
        %695 = vmatpush.msra.mxu0 0.0
        %696 = vmatpush.msra.mxu0 0.0
        %697 = vmatpush.msra.mxu0 0.0
        %698 = vmatpush.msra.mxu0 %v681
        %699 = vmatmul.f32.gmra.mxu0 %v669
        %v700 = vpop.f32.mrf.mxu0
        %v701 = vadd.f32 0.0, %v700
        %702 = vmatmul.f32.gmra.mxu0 %v672
        %v703 = vpop.f32.mrf.mxu0
        %v704 = vadd.f32 0.0, %v703
        %705 = vmatmul.f32.gmra.mxu0 %v675
        %v706 = vpop.f32.mrf.mxu0
        %v707 = vadd.f32 0.0, %v706
        %708 = vmatmul.f32.gmra.mxu0 %v678
        %v709 = vpop.f32.mrf.mxu0
        %v710 = vadd.f32 0.0, %v709
        %711 = vdwg.mxu0
        %v713 = vsel %vm447, %v498, 0
        %v716 = vsel %vm447, %v499, 0
        %718 = vmatpush.msra.mxu0 0.0
        %719 = vmatpush.msra.mxu0 0.0
        %720 = vmatpush.msra.mxu0 0.0
        %721 = vmatpush.msra.mxu0 0.0
        %722 = vmatpush.msra.mxu0 0.0
        %723 = vmatpush.msra.mxu0 0.0
        %724 = vmatpush.msra.mxu0 0.0
        %725 = vmatpush.msra.mxu0 0.0
        %726 = vmatpush.msra.mxu0 0.0
        %727 = vmatpush.msra.mxu0 0.0
        %728 = vmatpush.msra.mxu0 0.0
        %729 = vmatpush.msra.mxu0 0.0
        %730 = vmatpush.msra.mxu0 0.0
        %731 = vmatpush.msra.mxu0 0.0
        %732 = vmatpush.msra.mxu0 %v704
        %733 = vmatpush.msra.mxu0 %v701
        %734 = vmatmul.f32.gmra.mxu0 %v713
        %v735 = vpop.f32.mrf.mxu0
        %v736 = vadd.f32 0.0, %v735
        %737 = vmatmul.f32.gmra.mxu0 %v716
        %v738 = vpop.f32.mrf.mxu0
        %v739 = vadd.f32 0.0, %v738
        %740 = vdwg.mxu0
        %v742 = vsel %vm447, %v500, 0
        %v745 = vsel %vm447, %v501, 0
        %747 = vmatpush.msra.mxu0 0.0
        %748 = vmatpush.msra.mxu0 0.0
        %749 = vmatpush.msra.mxu0 0.0
        %750 = vmatpush.msra.mxu0 0.0
        %751 = vmatpush.msra.mxu0 0.0
        %752 = vmatpush.msra.mxu0 0.0
        %753 = vmatpush.msra.mxu0 0.0
        %754 = vmatpush.msra.mxu0 0.0
        %755 = vmatpush.msra.mxu0 0.0
        %756 = vmatpush.msra.mxu0 0.0
        %757 = vmatpush.msra.mxu0 0.0
        %758 = vmatpush.msra.mxu0 0.0
        %759 = vmatpush.msra.mxu0 0.0
        %760 = vmatpush.msra.mxu0 0.0
        %761 = vmatpush.msra.mxu0 %v710
        %762 = vmatpush.msra.mxu0 %v707
        %763 = vmatmul.f32.gmra.mxu0 %v742
        %v764 = vpop.f32.mrf.mxu0
        %v765 = vadd.f32 0.0, %v764
        %766 = vmatmul.f32.gmra.mxu0 %v745
        %v767 = vpop.f32.mrf.mxu0
        %v768 = vadd.f32 0.0, %v767
        %769 = vdwg.mxu0
        %v770 = vrot.slane %v736, 4
        %vm771 = vcmask 1047556
        %v772 = vsel %vm771, 0.0, %v770
        %v774 = vunpack.c.l.s4 1983009808
        %v775 = vunpack.c.0.s8 %v774
        %v776 = vperm.slane %v736, %v775
        %v778 = vunpack.c.l.s4 1983009808
        %v779 = vunpack.c.0.s8 %v778
        %v780 = vperm.slane %v772, %v779
        %v781 = vrot.slane %v765, 4
        %v782 = vsel %vm771, 0.0, %v781
        %v784 = vunpack.c.l.s4 1983009808
        %v785 = vunpack.c.0.s8 %v784
        %v786 = vperm.slane %v765, %v785
        %v788 = vunpack.c.l.s4 1983009808
        %v789 = vunpack.c.0.s8 %v788
        %v790 = vperm.slane %v782, %v789
        %v791 = vrot.slane %v786, 4
        %v792 = vsel %vm771, %v791, %v776
        %v793 = vrot.slane %v776, 4
        %v794 = vsel %vm771, %v786, %v793
        %v796 = vunpack.c.l.s4 1934713408
        %v797 = vunpack.c.0.s8 %v796
        %v798 = vperm.slane %v792, %v797
        %v800 = vunpack.c.l.s4 1934713408
        %v801 = vunpack.c.0.s8 %v800
        %v802 = vperm.slane %v794, %v801
        %v803 = vrot.slane %v790, 4
        %v804 = vsel %vm771, %v803, %v780
        %v805 = vrot.slane %v780, 4
        %v806 = vsel %vm771, %v790, %v805
        %v808 = vunpack.c.l.s4 1934713408
        %v809 = vunpack.c.0.s8 %v808
        %v810 = vperm.slane %v804, %v809
        %v812 = vunpack.c.l.s4 1934713408
        %v813 = vunpack.c.0.s8 %v812
        %v814 = vperm.slane %v806, %v813
        %v815 = vrot.slane %v798, 4
        %v816 = vsel %vm771, 0.0, %v815
        %v817 = vrot.slane %v802, 4
        %v818 = vsel %vm771, 0.0, %v817
        %v819 = vrot.slane %v810, 4
        %v820 = vsel %vm771, 0.0, %v819
        %v821 = vrot.slane %v814, 4
        %v822 = vsel %vm771, 0.0, %v821
        %v823 = vrot.slane %v739, 4
        %v824 = vsel %vm771, 0.0, %v823
        %v826 = vunpack.c.l.s4 1983009808
        %v827 = vunpack.c.0.s8 %v826
        %v828 = vperm.slane %v739, %v827
        %v830 = vunpack.c.l.s4 1983009808
        %v831 = vunpack.c.0.s8 %v830
        %v832 = vperm.slane %v824, %v831
        %v833 = vrot.slane %v768, 4
        %v834 = vsel %vm771, 0.0, %v833
        %v836 = vunpack.c.l.s4 1983009808
        %v837 = vunpack.c.0.s8 %v836
        %v838 = vperm.slane %v768, %v837
        %v840 = vunpack.c.l.s4 1983009808
        %v841 = vunpack.c.0.s8 %v840
        %v842 = vperm.slane %v834, %v841
        %v843 = vrot.slane %v838, 4
        %v844 = vsel %vm771, %v843, %v828
        %v845 = vrot.slane %v828, 4
        %v846 = vsel %vm771, %v838, %v845
        %v848 = vunpack.c.l.s4 1934713408
        %v849 = vunpack.c.0.s8 %v848
        %v850 = vperm.slane %v844, %v849
        %v852 = vunpack.c.l.s4 1934713408
        %v853 = vunpack.c.0.s8 %v852
        %v854 = vperm.slane %v846, %v853
        %v855 = vrot.slane %v842, 4
        %v856 = vsel %vm771, %v855, %v832
        %v857 = vrot.slane %v832, 4
        %v858 = vsel %vm771, %v842, %v857
        %v860 = vunpack.c.l.s4 1934713408
        %v861 = vunpack.c.0.s8 %v860
        %v862 = vperm.slane %v856, %v861
        %v864 = vunpack.c.l.s4 1934713408
        %v865 = vunpack.c.0.s8 %v864
        %v866 = vperm.slane %v858, %v865
        %v867 = vrot.slane %v850, 4
        %v868 = vsel %vm771, 0.0, %v867
        %v869 = vrot.slane %v854, 4
        %v870 = vsel %vm771, 0.0, %v869
        %v871 = vrot.slane %v862, 4
        %v872 = vsel %vm771, 0.0, %v871
        %v873 = vrot.slane %v866, 4
        %v874 = vsel %vm771, 0.0, %v873
        %876 = vrot.lane.b32.xlu0 %v816, 8
        %v877 = vpop.permute.xlu0 %876
        %880 = vrot.lane.b32.xlu0 %v802, 16
        %v881 = vpop.permute.xlu0 %880
        %884 = vrot.lane.b32.xlu0 %v818, 24
        %v885 = vpop.permute.xlu0 %884
        %888 = vrot.lane.b32.xlu0 %v810, 32
        %v889 = vpop.permute.xlu0 %888
        %892 = vrot.lane.b32.xlu0 %v820, 40
        %v893 = vpop.permute.xlu0 %892
        %896 = vrot.lane.b32.xlu0 %v814, 48
        %v897 = vpop.permute.xlu0 %896
        %900 = vrot.lane.b32.xlu0 %v822, 56
        %v901 = vpop.permute.xlu0 %900
        %904 = vrot.lane.b32.xlu0 %v850, 64
        %v905 = vpop.permute.xlu0 %904
        %908 = vrot.lane.b32.xlu0 %v868, 72
        %v909 = vpop.permute.xlu0 %908
        %912 = vrot.lane.b32.xlu0 %v854, 80
        %v913 = vpop.permute.xlu0 %912
        %916 = vrot.lane.b32.xlu0 %v870, 88
        %v917 = vpop.permute.xlu0 %916
        %920 = vrot.lane.b32.xlu0 %v862, 96
        %v921 = vpop.permute.xlu0 %920
        %924 = vrot.lane.b32.xlu0 %v872, 104
        %v925 = vpop.permute.xlu0 %924
        %928 = vrot.lane.b32.xlu0 %v866, 112
        %v929 = vpop.permute.xlu0 %928
        %932 = vrot.lane.b32.xlu0 %v874, 120
        %v933 = vpop.permute.xlu0 %932
        %v935 = vsel %vm376, %v798, %v877
        %v936 = vsel %vm447, %v935, %v881
        %vm937 = vcmask 195584
        %v938 = vsel %vm937, %v936, %v885
        %vm939 = vcmask 261120
        %v940 = vsel %vm939, %v938, %v889
        %vm941 = vcmask 326656
        %v942 = vsel %vm941, %v940, %v893
        %vm943 = vcmask 392192
        %v944 = vsel %vm943, %v942, %v897
        %vm945 = vcmask 457728
        %v946 = vsel %vm945, %v944, %v901
        %vm947 = vcmask 523264
        %v948 = vsel %vm947, %v946, %v905
        %vm949 = vcmask 588800
        %v950 = vsel %vm949, %v948, %v909
        %vm951 = vcmask 654336
        %v952 = vsel %vm951, %v950, %v913
        %vm953 = vcmask 719872
        %v954 = vsel %vm953, %v952, %v917
        %vm955 = vcmask 785408
        %v956 = vsel %vm955, %v954, %v921
        %vm957 = vcmask 850944
        %v958 = vsel %vm957, %v956, %v925
        %vm959 = vcmask 916480
        %v960 = vsel %vm959, %v958, %v929
        %vm961 = vcmask 982016
        %v962 = vsel %vm961, %v960, %v933
        %963 = vst [vmem:[%s274] sm:$0x3] %v962
        %s964 = sand.u32 %s181, 1
        %s965 = scalar_lea.sflag [#allocation3], %s964
        %s966 = sand.u32 %s181, 1
        %s967 = smul.addr %s966, 2
        %s968 = scalar_lea.vmem [#allocation2], %s967
        // Predicated region
        $region49: #{tpu_custom_call.1} parent=47 // pred_check
          %p969 = pneg %p191
        $region50: #{tpu_custom_call.1} parent=47 // pred_check_branch
          %971 = sbr.rel (%p969) target = $region52
        $region51: #{tpu_custom_call.1} parent=47 // pred_region
          %973 = vsyncadd %s965, 0
          %s974 = smul.addr %s21, 2
          %s975 = scalar_lea.hbm %s7, %s974
          %s977 = sshll.u32 %s968, 4
          %s978 = int_to_ptr.vmem [resolvable:$true] %s977
          %s979 = sshll.u32 %s975, 4
          %s980 = int_to_ptr.hbm [resolvable:$true] %s979
          %982 = dma.vmem_to_hbm [thread:$0]  %s978, 32, %s980, %s965
        $region52: #{tpu_custom_call.1} parent=47 // pred_fallthru
          _
      $region48: #{tpu_custom_call.1} parent=5 // pred_fallthru
        _
      %p983 = scmp.le.s32.totalorder 2, %s16
      // Predicated region
      $region53: #{tpu_custom_call.1} parent=5 // pred_check
        %p984 = pneg %p983
      $region54: #{tpu_custom_call.1} parent=5 // pred_check_branch
        %986 = sbr.rel (%p984) target = $region56
      $region55: #{tpu_custom_call.1} parent=5 // pred_region
        %s987 = ssub.s32 %s16, 2
        // Predicated region
        $region57: #{tpu_custom_call.1} parent=55 // pred_check
          %p988 = pneg %p197
        $region58: #{tpu_custom_call.1} parent=55 // pred_check_branch
          %990 = sbr.rel (%p988) target = $region60
        $region59: #{tpu_custom_call.1} parent=55 // pred_region
          %s991 = sand.u32 %s182, 1
          %s992 = scalar_lea.sflag [#allocation3], %s991
          %s993 = sand.u32 %s182, 1
          %s994 = smul.addr %s993, 2
          %s995 = scalar_lea.vmem [#allocation2], %s994
          %997 = dma.done %s992, 32
        $region60: #{tpu_custom_call.1} parent=55 // pred_fallthru
          _
      $region56: #{tpu_custom_call.1} parent=5 // pred_fallthru
        _
    $region6: #{tpu_custom_call.1} parent=1 // loop_footer
      %s20 = sadd.s32 1, %s16
    $region7: #{tpu_custom_call.1} parent=1 // loop_footer_branch
      %15 = sbr.rel target = $region3
    $region8: #{tpu_custom_call.1} parent=1 // loop_exit
      _
    %998 = vsyncpa [#allocation3], 1
    %s999 = scalar_lea.sflag [#allocation3], 1
    %1000 = vsyncpa %s999, 1

</llo_original>
